<compile_context>
chip_gen: v5e
topology: v5e:2x2
jax: 0.10.0
libtpu: 0.0.40
codegen_flags: <defaults>
</compile_context>

<pallas_src>
import functools

import jax
import jax.numpy as jnp
from jax import lax
from jax.experimental import pallas as pl
from jax.experimental.pallas import tpu as pltpu


# -----------------------------------------------------------------------------
# Kernel: per-row sum of squared differences (row = one (batch, channel) slab on
# the fast path, or one flattened batch row on the fallback path), accumulated
# lane-dense into a resident (1, 128) f32 output block.
# -----------------------------------------------------------------------------
def _row_ssd_kernel(rows_ref, p_ref, t_ref, o_ref, *, n_rows, tile_rows):
    # rows_ref is the scalar-prefetched row table; it is consumed only by the
    # BlockSpec index_maps (gather), not by the body.
    del rows_ref
    s = pl.program_id(1)

    @pl.when(s == 0)
    def _():
        o_ref[...] = jnp.zeros_like(o_ref)

    p = p_ref[0].astype(jnp.float32)          # (tile_rows, 128)
    t = t_ref[0].astype(jnp.float32)
    d = p - t
    dd = d * d

    if n_rows % tile_rows != 0:               # static: last spatial chunk ragged
        row = s * tile_rows + lax.broadcasted_iota(jnp.int32, (tile_rows, 128), 0)
        dd = jnp.where(row < n_rows, dd, 0.0)

    # Mostly VPU vreg-row adds with a tiny cross-sublane tail; result stays
    # lane-dense and resident in the output block (no width-1 masked stores in
    # the hot loop).
    o_ref[...] += jnp.sum(dd, axis=0, keepdims=True)[None]


def _tile_rows_and_vmem(n_rows: int, itemsize: int):
    """Pick the spatial tile (in 128-lane rows) from a generation-aware VMEM budget."""
    try:
        vmem_cap = int(pltpu.get_tpu_info().vmem_capacity_bytes)
    except Exception:
        vmem_cap = 64 * 1024 * 1024           # conservative: v7x per-TC VMEM
    budget = vmem_cap // 2                    # leave half of VMEM as headroom
    # Per-step footprint: 2 inputs x 2 pipeline buffers x tile_rows x 128 x itemsize
    per_row = 2 * 2 * 128 * itemsize
    tr_cap = max(8, (budget // per_row) // 8 * 8)
    tr = min(n_rows, tr_cap)
    if tr < n_rows:                           # partial tiling -> sublane aligned
        tr = max(8, (tr // 8) * 8)
    need = 2 * 2 * tr * 128 * itemsize + (2 << 20)
    vmem_limit = int(min(vmem_cap - (4 << 20), max(need, 32 * 1024 * 1024)))
    return tr, vmem_limit


def _per_row_ssd(pred3, tgt3, row_ids):
    """pred3 / tgt3: (total_rows, n_rows, 128); row_ids: (R,) int32 rows to reduce.

    Returns (R, 1, 128) f32 lane-partial sums of squared differences.
    """
    _, n_rows, lanes = pred3.shape
    assert lanes == 128
    R = int(row_ids.shape[0])
    tr, vmem_limit = _tile_rows_and_vmem(int(n_rows), pred3.dtype.itemsize)
    ns = -(-int(n_rows) // tr)

    kernel = functools.partial(_row_ssd_kernel, n_rows=int(n_rows), tile_rows=tr)
    return pl.pallas_call(
        kernel,
        out_shape=jax.ShapeDtypeStruct((R, 1, 128), jnp.float32),
        grid_spec=pltpu.PrefetchScalarGridSpec(
            num_scalar_prefetch=1,
            grid=(R, ns),
            in_specs=[
                pl.BlockSpec((1, tr, 128), lambda r, s, rows: (rows[r], s, 0)),
                pl.BlockSpec((1, tr, 128), lambda r, s, rows: (rows[r], s, 0)),
            ],
            out_specs=pl.BlockSpec((1, 1, 128), lambda r, s, rows: (r, 0, 0)),
        ),
        compiler_params=pltpu.CompilerParams(
            dimension_semantics=("parallel", "arbitrary"),
            vmem_limit_bytes=vmem_limit,
        ),
    )(row_ids, pred3, tgt3)


class ConsistencyLoss:
    """JAX/Pallas port of the PyTorch ConsistencyLoss module. Returns (loss, None)."""

    def __init__(self, **kwargs):
        self.target_str = kwargs["target_str"]
        self.pred_name = kwargs["pred_name"]
        self.idc = kwargs["idc"]
        self.loss_type = kwargs.get("loss_type", "MSE")

    def __call__(self, probs, batch, eps=1e-08, **kwargs):
        # NOTE: `eps` is accepted but unused — identical to the PyTorch forward.
        # TODO(synk): sqrt(0) has an unbounded gradient; if training with the L2
        # loss on identical pred/target, add eps inside the sqrt upstream.
        target = batch[self.target_str]
        pred = batch[self.pred_name]

        B, C = int(pred.shape[0]), int(pred.shape[1])
        hw = 1
        for s_ in pred.shape[2:]:
            hw *= int(s_)

        if self.idc != []:
            chans = []
            for c in self.idc:
                c = int(c)
                if not (-C <= c < C):
                    raise IndexError(f"idc index {c} out of range for {C} channels")
                chans.append(c % C)
        else:
            chans = list(range(C))
        csel = len(chans)
        n_elem = csel * hw                     # per-sample selected element count

        if hw % 128 == 0 and hw > 0:
            # ---- fast path: no gather / no pad HBM copies ----------------------
            nr = hw // 128
            p3 = pred.reshape(B * C, nr, 128)   # free, layout-preserving view
            t3 = target.reshape(B * C, nr, 128)
            row_ids = (jnp.arange(B, dtype=jnp.int32)[:, None] * C
                       + jnp.asarray(chans, dtype=jnp.int32)[None, :]).reshape(-1)
            partials = _per_row_ssd(p3, t3, row_ids)            # (B*csel, 1, 128)
            ssd = partials.reshape(B, csel * 128).sum(axis=-1)  # (B,) f32
        else:
            # ---- fallback: spatial size not a multiple of 128 ------------------
            # TODO(synk): this path pays one extra HBM pass for the gather/pad.
            if self.idc != []:
                idx = jnp.asarray(chans, dtype=jnp.int32)
                pred_s = jnp.take(pred, idx, axis=1)
                tgt_s = jnp.take(target, idx, axis=1)
            else:
                pred_s, tgt_s = pred, target
            D = n_elem
            nr = -(-D // 128)
            pad = nr * 128 - D
            p2 = pred_s.reshape(B, D)
            t2 = tgt_s.reshape(B, D)
            if pad:
                p2 = jnp.pad(p2, ((0, 0), (0, pad)))
                t2 = jnp.pad(t2, ((0, 0), (0, pad)))
            p3 = p2.reshape(B, nr, 128)
            t3 = t2.reshape(B, nr, 128)
            row_ids = jnp.arange(B, dtype=jnp.int32)
            partials = _per_row_ssd(p3, t3, row_ids)            # (B, 1, 128)
            ssd = partials.reshape(B, 128).sum(axis=-1)         # (B,) f32

        if self.loss_type == "MSE":
            # nn.MSELoss() with 'mean' reduction, then squared
            mse = jnp.sum(ssd) / jnp.float32(B * n_elem)
            loss = mse ** 2
        elif self.loss_type == "L2":
            # sqrt of per-sample sum over dims [1,2,3], then mean over batch
            loss = jnp.mean(jnp.sqrt(ssd))
        else:
            raise ValueError(f"unknown loss_type {self.loss_type}")

        return (loss, None)


if __name__ == "__main__":
    key = jax.random.PRNGKey(0)
    k1, k2, k3 = jax.random.split(key, 3)

    B, C, H, W = 2, 4, 16, 16
    probs = jax.random.uniform(k1, (B, C, H, W), dtype=jnp.float32)   # unused by forward
    pred = jax.random.normal(k2, (B, C, H, W), dtype=jnp.float32)
    target = pred + 0.1 * jax.random.normal(k3, (B, C, H, W), dtype=jnp.float32)
    batch = {"gt_transformed": target, "pred_transformed": pred}

    kw = dict(target_str="gt_transformed", pred_name="pred_transformed", idc=[0, 1, 2])

    loss_mse, _ = ConsistencyLoss(loss_type="MSE", **kw)(probs, batch)
    loss_l2, _ = ConsistencyLoss(loss_type="L2", **kw)(probs, batch)
    loss_mse = jax.block_until_ready(loss_mse)
    loss_l2 = jax.block_until_ready(loss_l2)

    # Reference (plain JAX) for the idc path.
    sel = jnp.array([0, 1, 2])
    p_sel, t_sel = pred[:, sel, ...], target[:, sel, ...]
    ref_mse = jnp.mean((p_sel - t_sel) ** 2) ** 2
    ref_l2 = jnp.mean(jnp.sqrt(jnp.sum((p_sel - t_sel) ** 2, axis=(1, 2, 3))))
    assert jnp.allclose(loss_mse, ref_mse, rtol=1e-5, atol=1e-6), (loss_mse, ref_mse)
    assert jnp.allclose(loss_l2, ref_l2, rtol=1e-5, atol=1e-6), (loss_l2, ref_l2)

    # idc == [] (all channels): fast path without selection.
    loss_all, _ = ConsistencyLoss(target_str="gt_transformed",
                                  pred_name="pred_transformed",
                                  idc=[], loss_type="MSE")(probs, batch)
    loss_all = jax.block_until_ready(loss_all)
    ref_all = jnp.mean((pred - target) ** 2) ** 2
    assert jnp.allclose(loss_all, ref_all, rtol=1e-5, atol=1e-6), (loss_all, ref_all)

    # Odd spatial size (H*W % 128 != 0): exercises the fallback path.
    H2, W2 = 10, 10
    pred2 = jax.random.normal(k2, (B, C, H2, W2), dtype=jnp.float32)
    target2 = pred2 + 0.1 * jax.random.normal(k3, (B, C, H2, W2), dtype=jnp.float32)
    batch2 = {"gt_transformed": target2, "pred_transformed": pred2}
    loss_fb, _ = ConsistencyLoss(loss_type="L2", **kw)(probs, batch2)
    loss_fb = jax.block_until_ready(loss_fb)
    p2s, t2s = pred2[:, sel, ...], target2[:, sel, ...]
    ref_fb = jnp.mean(jnp.sqrt(jnp.sum((p2s - t2s) ** 2, axis=(1, 2, 3))))
    assert jnp.allclose(loss_fb, ref_fb, rtol=1e-5, atol=1e-6), (loss_fb, ref_fb)

    print("KERNEL_OK")
</pallas_src>

<mosaic_0001>
module attributes {stable_mosaic.version = 11 : i64} {
  func.func @_row_ssd_kernel(%arg0: i32, %arg1: i32, %arg2: memref<6xi32, #tpu.memory_space<smem>>, %arg3: memref<1x2x128xf32, #tpu.memory_space<vmem>>, %arg4: memref<1x2x128xf32, #tpu.memory_space<vmem>>, %arg5: memref<1x1x128xf32, #tpu.memory_space<vmem>>) attributes {dimension_semantics = [#tpu.dimension_semantics<parallel>, #tpu.dimension_semantics<arbitrary>], iteration_bounds = array<i64: 6, 1>, scalar_prefetch = 1 : i64, scratch_operands = 0 : i64, tpu.core_type = #tpu.core_type<tc>, window_params = [{transform_indices = @transform_0, window_bounds = array<i64: 1, 2, 128>}, {transform_indices = @transform_1, window_bounds = array<i64: 1, 2, 128>}, {transform_indices = @transform_2, window_bounds = array<i64: 1, 1, 128>}]} {
    %c0_i32 = arith.constant 0 : i32
    %0 = arith.cmpi eq, %arg1, %c0_i32 : i32
    %1 = arith.extui %0 : i1 to i32
    %c0_i32_0 = arith.constant 0 : i32
    %2 = arith.cmpi ne, %1, %c0_i32_0 : i32
    scf.if %2 {
      %cst_12 = arith.constant 0.000000e+00 : f32
      %15 = vector.broadcast %cst_12 : f32 to vector<1x1x128xf32>
      %c0_13 = arith.constant 0 : index
      %c0_14 = arith.constant 0 : index
      %c0_15 = arith.constant 0 : index
      %16 = vector.load %arg5[%c0_13, %c0_14, %c0_15] : memref<1x1x128xf32, #tpu.memory_space<vmem>>, vector<1x1x128xf32>
      tpu.vector_store %arg5[%c0_13, %c0_14, %c0_15], %15 {strides = array<i32>} : memref<1x1x128xf32, #tpu.memory_space<vmem>>, vector<1x1x128xf32>,
    } else {
    }
    %c0 = arith.constant 0 : index
    %c0_1 = arith.constant 0 : index
    %c0_2 = arith.constant 0 : index
    %3 = vector.load %arg3[%c0, %c0_1, %c0_2] : memref<1x2x128xf32, #tpu.memory_space<vmem>>, vector<1x2x128xf32>
    %4 = vector.shape_cast %3 : vector<1x2x128xf32> to vector<2x128xf32>
    %c0_3 = arith.constant 0 : index
    %c0_4 = arith.constant 0 : index
    %c0_5 = arith.constant 0 : index
    %5 = vector.load %arg4[%c0_3, %c0_4, %c0_5] : memref<1x2x128xf32, #tpu.memory_space<vmem>>, vector<1x2x128xf32>
    %6 = vector.shape_cast %5 : vector<1x2x128xf32> to vector<2x128xf32>
    %7 = arith.subf %4, %6 : vector<2x128xf32>
    %8 = arith.mulf %7, %7 : vector<2x128xf32>
    %c0_6 = arith.constant 0 : index
    %c0_7 = arith.constant 0 : index
    %c0_8 = arith.constant 0 : index
    %9 = vector.load %arg5[%c0_6, %c0_7, %c0_8] : memref<1x1x128xf32, #tpu.memory_space<vmem>>, vector<1x1x128xf32>
    %cst = arith.constant dense<0.000000e+00> : vector<128xf32>
    %10 = vector.multi_reduction <add>, %8, %cst [0] : vector<2x128xf32> to vector<128xf32>
    %11 = vector.shape_cast %10 : vector<128xf32> to vector<1x128xf32>
    %12 = vector.shape_cast %11 : vector<1x128xf32> to vector<1x1x128xf32>
    %13 = arith.addf %9, %12 : vector<1x1x128xf32>
    %c0_9 = arith.constant 0 : index
    %c0_10 = arith.constant 0 : index
    %c0_11 = arith.constant 0 : index
    %14 = vector.load %arg5[%c0_9, %c0_10, %c0_11] : memref<1x1x128xf32, #tpu.memory_space<vmem>>, vector<1x1x128xf32>
    tpu.vector_store %arg5[%c0_9, %c0_10, %c0_11], %13 {strides = array<i32>} : memref<1x1x128xf32, #tpu.memory_space<vmem>>, vector<1x1x128xf32>,
    return
  }
  func.func @transform_0(%arg0: i32, %arg1: i32, %arg2: memref<6xi32, #tpu.memory_space<smem>>) -> (i32, i32, i32) {
    %0 = arith.index_cast %arg0 : i32 to index
    %1 = memref.load %arg2[%0] : memref<6xi32, #tpu.memory_space<smem>>
    %c0_i32 = arith.constant 0 : i32
    %c0_i32_0 = arith.constant 0 : i32
    return %1, %arg1, %c0_i32 : i32, i32, i32
  }
  func.func @transform_1(%arg0: i32, %arg1: i32, %arg2: memref<6xi32, #tpu.memory_space<smem>>) -> (i32, i32, i32) {
    %0 = arith.index_cast %arg0 : i32 to index
    %1 = memref.load %arg2[%0] : memref<6xi32, #tpu.memory_space<smem>>
    %c0_i32 = arith.constant 0 : i32
    %c0_i32_0 = arith.constant 0 : i32
    return %1, %arg1, %c0_i32 : i32, i32, i32
  }
  func.func @transform_2(%arg0: i32, %arg1: i32, %arg2: memref<6xi32, #tpu.memory_space<smem>>) -> (i32, i32, i32) {
    %c0_i32 = arith.constant 0 : i32
    %c0_i32_0 = arith.constant 0 : i32
    %c0_i32_1 = arith.constant 0 : i32
    return %arg0, %c0_i32, %c0_i32_0 : i32, i32, i32
  }
}

</mosaic_0001>

<llo_original>
// kernel: tpu_custom_call.1
$region0: #{tpu_custom_call.1}
  #allocation0 [shape = 'u32[]', space=smem, size = 0x4, offset = 0x4, fixed_abs, tag = 'smem constant byte address 0x4 - core index']
  #allocation1 [shape = 'u32[72,128]{1,0:T(1,128)}', space=vmem, size = 0x9000, scoped, tag = 'internal scratch']
  #allocation2 [shape = 's32[1]{0}', space=sflag, size = 0x4, scoped, tag = 'scoped memory for tpu_custom_call.1']
  #allocation3 [shape = 'u8[512]{0}', space=smem, size = 0x200, scoped, tag = 'prefetched SMEM operand 0']
  %s0 = inlined_call_operand.hbm [shape: s32[6], index: 0, kind: input, shape index: {}]
  %s1 = inlined_call_operand.hbm [shape: f32[8,2,128], index: 1, kind: input, shape index: {}]
  %s2 = inlined_call_operand.hbm [shape: f32[8,2,128], index: 2, kind: input, shape index: {}]
  %s3 = inlined_call_operand.hbm [shape: f32[6,1,128], index: 3, kind: output, shape index: {}]
  %s4 = sld [smem:[#allocation0]]
  $region53: #{tpu_custom_call.1} parent=0
    _
  %s6 = ssub.s32 1, %s4
  %s7 = scalar_select 0, %s6, %s4
  %s9 = sshll.u32 %s0, 4
  %s10 = int_to_ptr.hbm [resolvable:$true] %s9
  %12 = dma.hbm_to_smem %s10, 16, [#allocation3], [#allocation2]
  %14 = dma.done [#allocation2], 16
  %15 = sfence
  $region1: #{tpu_custom_call.1} parent=0
    #allocation4 [shape = 'u8[2048]{0}', space=vmem, size = 0x800, scoped, tag = 'input window, operand 1']
    #allocation5 [shape = 's32[2]{0}', space=sflag, size = 0x8, scoped, tag = 'scoped memory for tpu_custom_call.1']
    #allocation6 [shape = 's32[2]{0}', space=sflag, size = 0x8, scoped, tag = 'scoped memory for tpu_custom_call.1']
    #allocation7 [shape = 'u8[2048]{0}', space=vmem, size = 0x800, scoped, tag = 'input window, operand 2']
    #allocation8 [shape = 's32[2]{0}', space=sflag, size = 0x8, scoped, tag = 'scoped memory for tpu_custom_call.1']
    #allocation9 [shape = 'u8[1024]{0}', space=vmem, size = 0x400, scoped, tag = 'output window, operand 0']
    %16 = vsyncpa [#allocation5], 0
    %s17 = scalar_lea.sflag [#allocation5], 1
    %18 = vsyncpa %s17, 0
    %19 = vsyncpa [#allocation8], 0
    %s20 = scalar_lea.sflag [#allocation8], 1
    %21 = vsyncpa %s20, 0
    %22 = vsyncpa [#allocation6], 0
    %s23 = scalar_lea.sflag [#allocation6], 1
    %24 = vsyncpa %s23, 0
    loop: start=0, step=1, limit=8
    $region2: #{tpu_custom_call.1} parent=1 // loop_pre_header
      _
    $region3: #{tpu_custom_call.1} parent=1 // loop_header
      %s26 = sphi 0, %s30
      %p27 = scmp.ge.s32.totalorder %s26, 8
      %s33 = sphi 0, %s45
      %s34 = sphi 0, %s41
      %s35 = sphi 0, %s33
      %s36 = sphi 0, %s34
      %s37 = sphi 0, %s35
      %s38 = sphi 0, %s36
      %s52 = sphi 0, %s54
      %s55 = sphi 0, %s52
      %s56 = sphi 0, %s55
      %s72 = sphi 0, %s56
      %s82 = sphi 0, %s84
      %s85 = sphi 0, %s82
      %s86 = sphi 0, %s85
      %s102 = sphi 0, %s86
      %s108 = sphi 0, %s110
      %s111 = sphi 0, %s108
      %s112 = sphi 0, %s111
      %s128 = sphi 0, %s112
    $region4: #{tpu_custom_call.1} parent=1 // loop_header_branch
      %29 = sbr.rel (%p27) target = $region8
    $region5: #{tpu_custom_call.1} parent=1 // loop_body
      %s31 = ssub.s32 %s26, 1
      %s32 = ssub.s32 %s26, 2
      %s39 = sadd.s32 1, %s34
      %p40 = scmp.ge.s32.totalorder %s39, 1
      %s41 = scalar_select %p40, 0, %s39
      %s42 = sadd.s32 1, %s33
      %s43 = scalar_select %p40, %s42, %s33
      %p44 = scmp.ge.s32.totalorder %s43, 6
      %s45 = scalar_select %p44, 0, %s43
      %s46 = sld [smem:[#allocation3 + %s33]]
      %s47 = sld [smem:[#allocation3 + %s45]]
      %s48 = ssub.s32 %s46, %s47
      %s49 = ssub.s32 %s34, %s41
      %s50 = sor.u32 %s48, %s49
      %p51 = scmp.eq.s32.totalorder %s50, 0
      %s53 = sadd.s32 %s52, 1
      %s54 = scalar_select %p51, %s52, %s53
      %p57 = pneg %p51
      %p58 = scmp.eq.s32.totalorder %s26, 5
      %p59 = por %p57, %p58
      %p60 = scmp.ne.s32.totalorder %s52, %s55
      %p61 = scmp.eq.s32.totalorder %s26, 0
      %p62 = por %p60, %p61
      %p63 = scmp.ne.s32.totalorder %s52, %s55
      %p64 = scmp.eq.s32.totalorder %s31, 5
      %p65 = por %p63, %p64
      %p66 = scmp.ne.s32.totalorder %s55, %s56
      %p67 = scmp.eq.s32.totalorder %s31, 0
      %p68 = por %p66, %p67
      %p69 = scmp.ne.s32.totalorder %s55, %s56
      %p70 = scmp.eq.s32.totalorder %s32, 5
      %p71 = por %p69, %p70
      %p73 = scmp.ne.s32.totalorder %s56, %s72
      %p74 = scmp.eq.s32.totalorder %s32, 0
      %p75 = por %p73, %p74
      %s76 = sld [smem:[#allocation3 + %s33]]
      %s77 = sld [smem:[#allocation3 + %s45]]
      %s78 = ssub.s32 %s76, %s77
      %s79 = ssub.s32 %s34, %s41
      %s80 = sor.u32 %s78, %s79
      %p81 = scmp.eq.s32.totalorder %s80, 0
      %s83 = sadd.s32 %s82, 1
      %s84 = scalar_select %p81, %s82, %s83
      %p87 = pneg %p81
      %p88 = scmp.eq.s32.totalorder %s26, 5
      %p89 = por %p87, %p88
      %p90 = scmp.ne.s32.totalorder %s82, %s85
      %p91 = scmp.eq.s32.totalorder %s26, 0
      %p92 = por %p90, %p91
      %p93 = scmp.ne.s32.totalorder %s82, %s85
      %p94 = scmp.eq.s32.totalorder %s31, 5
      %p95 = por %p93, %p94
      %p96 = scmp.ne.s32.totalorder %s85, %s86
      %p97 = scmp.eq.s32.totalorder %s31, 0
      %p98 = por %p96, %p97
      %p99 = scmp.ne.s32.totalorder %s85, %s86
      %p100 = scmp.eq.s32.totalorder %s32, 5
      %p101 = por %p99, %p100
      %p103 = scmp.ne.s32.totalorder %s86, %s102
      %p104 = scmp.eq.s32.totalorder %s32, 0
      %p105 = por %p103, %p104
      %s106 = ssub.s32 %s33, %s45
      %p107 = scmp.eq.s32.totalorder %s106, 0
      %s109 = sadd.s32 %s108, 1
      %s110 = scalar_select %p107, %s108, %s109
      %p113 = pneg %p107
      %p114 = scmp.eq.s32.totalorder %s26, 5
      %p115 = por %p113, %p114
      %p116 = scmp.ne.s32.totalorder %s108, %s111
      %p117 = scmp.eq.s32.totalorder %s26, 0
      %p118 = por %p116, %p117
      %p119 = scmp.ne.s32.totalorder %s108, %s111
      %p120 = scmp.eq.s32.totalorder %s31, 5
      %p121 = por %p119, %p120
      %p122 = scmp.ne.s32.totalorder %s111, %s112
      %p123 = scmp.eq.s32.totalorder %s31, 0
      %p124 = por %p122, %p123
      %p125 = scmp.ne.s32.totalorder %s111, %s112
      %p126 = scmp.eq.s32.totalorder %s32, 5
      %p127 = por %p125, %p126
      %p129 = scmp.ne.s32.totalorder %s112, %s128
      %p130 = scmp.eq.s32.totalorder %s32, 0
      %p131 = por %p129, %p130
      %p132 = scmp.le.s32.totalorder 1, %s26
      %p133 = scmp.lt.s32.totalorder %s26, 7
      %p134 = pnand %p132, %p133
      %p135 = pneg %p134
      // Predicated region
      $region9: #{tpu_custom_call.1} parent=5 // pred_check
        _
      $region10: #{tpu_custom_call.1} parent=5 // pred_check_branch
        %137 = sbr.rel (%p134) target = $region12
      $region11: #{tpu_custom_call.1} parent=5 // pred_region
        %s138 = ssub.s32 %s26, 1
      $region12: #{tpu_custom_call.1} parent=5 // pred_fallthru
        _
      %p139 = scmp.lt.s32.totalorder %s26, 6
      // Predicated region
      $region13: #{tpu_custom_call.1} parent=5 // pred_check
        %p140 = pneg %p139
      $region14: #{tpu_custom_call.1} parent=5 // pred_check_branch
        %142 = sbr.rel (%p140) target = $region16
      $region15: #{tpu_custom_call.1} parent=5 // pred_region
        // Predicated region
        $region17: #{tpu_custom_call.1} parent=15 // pred_check
          %p143 = pneg %p62
        $region18: #{tpu_custom_call.1} parent=15 // pred_check_branch
          %145 = sbr.rel (%p143) target = $region20
        $region19: #{tpu_custom_call.1} parent=15 // pred_region
          %s146 = sand.u32 %s52, 1
          %s147 = scalar_lea.sflag [#allocation5], %s146
          %s148 = sand.u32 %s52, 1
          %s149 = smul.addr %s148, 2
          %s150 = scalar_lea.vmem [#allocation4], %s149
          %s151 = sld [smem:[#allocation3 + %s33]]
          %153 = vsyncadd %s147, 0
          %s154 = sadd.s32 %s34, %s151
          %s155 = smul.addr %s154, 2
          %s156 = scalar_lea.hbm %s1, %s155
          %s158 = sshll.u32 %s156, 4
          %s159 = int_to_ptr.hbm [resolvable:$true] %s158
          %s160 = sshll.u32 %s150, 4
          %s161 = int_to_ptr.vmem [resolvable:$true] %s160
          %163 = dma.hbm_to_vmem [thread:$0]  %s159, 32, %s161, %s147
        $region20: #{tpu_custom_call.1} parent=15 // pred_fallthru
          _
        // Predicated region
        $region21: #{tpu_custom_call.1} parent=15 // pred_check
          %p164 = pneg %p92
        $region22: #{tpu_custom_call.1} parent=15 // pred_check_branch
          %166 = sbr.rel (%p164) target = $region24
        $region23: #{tpu_custom_call.1} parent=15 // pred_region
          %s167 = sand.u32 %s82, 1
          %s168 = scalar_lea.sflag [#allocation8], %s167
          %s169 = sand.u32 %s82, 1
          %s170 = smul.addr %s169, 2
          %s171 = scalar_lea.vmem [#allocation7], %s170
          %s172 = sld [smem:[#allocation3 + %s33]]
          %174 = vsyncadd %s168, 0
          %s175 = sadd.s32 %s34, %s172
          %s176 = smul.addr %s175, 2
          %s177 = scalar_lea.hbm %s2, %s176
          %s179 = sshll.u32 %s177, 4
          %s180 = int_to_ptr.hbm [resolvable:$true] %s179
          %s181 = sshll.u32 %s171, 4
          %s182 = int_to_ptr.vmem [resolvable:$true] %s181
          %184 = dma.hbm_to_vmem [thread:$0]  %s180, 32, %s182, %s168
        $region24: #{tpu_custom_call.1} parent=15 // pred_fallthru
          _
      $region16: #{tpu_custom_call.1} parent=5 // pred_fallthru
        _
      %p185 = scmp.le.s32.totalorder 1, %s26
      %p186 = scmp.lt.s32.totalorder %s26, 7
      %p187 = pnand %p185, %p186
      %p188 = pneg %p187
      // Predicated region
      $region25: #{tpu_custom_call.1} parent=5 // pred_check
        _
      $region26: #{tpu_custom_call.1} parent=5 // pred_check_branch
        %190 = sbr.rel (%p187) target = $region28
      $region27: #{tpu_custom_call.1} parent=5 // pred_region
        %s191 = ssub.s32 %s26, 1
        %s192 = sand.u32 %s55, 1
        %s193 = scalar_lea.sflag [#allocation5], %s192
        %s194 = sand.u32 %s55, 1
        %s195 = smul.addr %s194, 2
        %s196 = scalar_lea.vmem [#allocation4], %s195
        // Predicated region
        $region29: #{tpu_custom_call.1} parent=27 // pred_check
          %p197 = pneg %p68
        $region30: #{tpu_custom_call.1} parent=27 // pred_check_branch
          %199 = sbr.rel (%p197) target = $region32
        $region31: #{tpu_custom_call.1} parent=27 // pred_region
          %201 = dma.done %s193, 32
        $region32: #{tpu_custom_call.1} parent=27 // pred_fallthru
          _
        %s202 = sand.u32 %s85, 1
        %s203 = scalar_lea.sflag [#allocation8], %s202
        %s204 = sand.u32 %s85, 1
        %s205 = smul.addr %s204, 2
        %s206 = scalar_lea.vmem [#allocation7], %s205
        // Predicated region
        $region33: #{tpu_custom_call.1} parent=27 // pred_check
          %p207 = pneg %p98
        $region34: #{tpu_custom_call.1} parent=27 // pred_check_branch
          %209 = sbr.rel (%p207) target = $region36
        $region35: #{tpu_custom_call.1} parent=27 // pred_region
          %211 = dma.done %s203, 32
        $region36: #{tpu_custom_call.1} parent=27 // pred_fallthru
          _
        %s212 = sand.u32 %s55, 1
        %s213 = scalar_lea.sflag [#allocation5], %s212
        %s214 = sand.u32 %s55, 1
        %s215 = smul.addr %s214, 2
        %s216 = scalar_lea.vmem [#allocation4], %s215
        %p217 = pneg %p68
        %p218 = pneg %p65
        %s219 = sand.u32 %s85, 1
        %s220 = scalar_lea.sflag [#allocation8], %s219
        %s221 = sand.u32 %s85, 1
        %s222 = smul.addr %s221, 2
        %s223 = scalar_lea.vmem [#allocation7], %s222
        %p224 = pneg %p98
        %p225 = pneg %p95
        %p226 = pneg %p124
        %p227 = pneg %p121
        %s228 = sand.u32 %s111, 1
        %s229 = scalar_lea.sflag [#allocation6], %s228
        %s230 = sand.u32 %s111, 1
        %s231 = scalar_lea.vmem [#allocation9], %s230
        %s232 = sld [smem:[#allocation3 + %s35]]
        %s233 = sld [smem:[#allocation3 + %s35]]
        %p234 = scmp.eq.s32.totalorder %s36, 0
        // Predicated region
        $region37: #{tpu_custom_call.1} parent=27 // pred_check
          %p235 = pneg %p234
        $region38: #{tpu_custom_call.1} parent=27 // pred_check_branch
          %237 = sbr.rel (%p235) target = $region40
        $region39: #{tpu_custom_call.1} parent=27 // pred_region
          %238 = vst [vmem:[%s231] sm:$0x1] 0.0
        $region40: #{tpu_custom_call.1} parent=27 // pred_fallthru
          _
        %v239 = vld [vmem:[%s196] sm:$0x3]
        %v240 = vld [vmem:[%s206] sm:$0x3]
        %v241 = vsub.f32 %v239, %v240
        %v242 = vmul.f32 %v241, %v241
        %v243 = vld [vmem:[%s231] sm:$0x1]
        %vm244 = vcmask 1041408
        %v245 = vsel %vm244, %v242, 0.0
        %v246 = vrot.slane %v245, 4
        %v247 = vadd.f32 %v245, %v246
        %v248 = vrot.slane %v247, 2
        %v249 = vadd.f32 %v247, %v248
        %v250 = vrot.slane %v249, 1
        %v251 = vadd.f32 %v249, %v250
        %v252 = vadd.f32 %v243, %v251
        %253 = vst [vmem:[%s231] sm:$0x1] %v252
        %s254 = sand.u32 %s111, 1
        %s255 = scalar_lea.sflag [#allocation6], %s254
        %s256 = sand.u32 %s111, 1
        %s257 = scalar_lea.vmem [#allocation9], %s256
        // Predicated region
        $region41: #{tpu_custom_call.1} parent=27 // pred_check
          %p258 = pneg %p121
        $region42: #{tpu_custom_call.1} parent=27 // pred_check_branch
          %260 = sbr.rel (%p258) target = $region44
        $region43: #{tpu_custom_call.1} parent=27 // pred_region
          %262 = vsyncadd %s255, 0
          %s263 = scalar_lea.hbm %s3, %s35
          %s265 = sshll.u32 %s257, 4
          %s266 = int_to_ptr.vmem [resolvable:$true] %s265
          %s267 = sshll.u32 %s263, 4
          %s268 = int_to_ptr.hbm [resolvable:$true] %s267
          %270 = dma.vmem_to_hbm [thread:$0]  %s266, 16, %s268, %s255
        $region44: #{tpu_custom_call.1} parent=27 // pred_fallthru
          _
      $region28: #{tpu_custom_call.1} parent=5 // pred_fallthru
        _
      %p271 = scmp.le.s32.totalorder 2, %s26
      // Predicated region
      $region45: #{tpu_custom_call.1} parent=5 // pred_check
        %p272 = pneg %p271
      $region46: #{tpu_custom_call.1} parent=5 // pred_check_branch
        %274 = sbr.rel (%p272) target = $region48
      $region47: #{tpu_custom_call.1} parent=5 // pred_region
        %s275 = ssub.s32 %s26, 2
        // Predicated region
        $region49: #{tpu_custom_call.1} parent=47 // pred_check
          %p276 = pneg %p127
        $region50: #{tpu_custom_call.1} parent=47 // pred_check_branch
          %278 = sbr.rel (%p276) target = $region52
        $region51: #{tpu_custom_call.1} parent=47 // pred_region
          %s279 = sand.u32 %s112, 1
          %s280 = scalar_lea.sflag [#allocation6], %s279
          %s281 = sand.u32 %s112, 1
          %s282 = scalar_lea.vmem [#allocation9], %s281
          %284 = dma.done %s280, 16
        $region52: #{tpu_custom_call.1} parent=47 // pred_fallthru
          _
      $region48: #{tpu_custom_call.1} parent=5 // pred_fallthru
        _
    $region6: #{tpu_custom_call.1} parent=1 // loop_footer
      %s30 = sadd.s32 1, %s26
    $region7: #{tpu_custom_call.1} parent=1 // loop_footer_branch
      %25 = sbr.rel target = $region3
    $region8: #{tpu_custom_call.1} parent=1 // loop_exit
      _
    %285 = vsyncpa [#allocation5], 1
    %s286 = scalar_lea.sflag [#allocation5], 1
    %287 = vsyncpa %s286, 1
    %288 = vsyncpa [#allocation8], 1
    %s289 = scalar_lea.sflag [#allocation8], 1
    %290 = vsyncpa %s289, 1
    %291 = vsyncpa [#allocation6], 1
    %s292 = scalar_lea.sflag [#allocation6], 1
    %293 = vsyncpa %s292, 1

</llo_original>
